<compile_context>
chip_gen: v5e
topology: v5e:2x2
jax: 0.10.0
libtpu: 0.0.40
codegen_flags: <defaults>
</compile_context>

<pallas_src>
import functools

import jax
import jax.numpy as jnp
from jax import lax
from jax.experimental import pallas as pl
from jax.experimental.pallas import tpu as pltpu

_LANE = 128


# ----------------------------------------------------------------------------- helpers
def _round_up(x, m):
    return (x + m - 1) // m * m


def _sublane_multiple(dtype):
    # Packed sublane multiple: 8 rows for 4-byte, 16 for 2-byte, 32 for 1-byte dtypes.
    return {4: 8, 2: 16, 1: 32}.get(jnp.dtype(dtype).itemsize, 8)


@functools.lru_cache(maxsize=None)
def _vmem_budget():
    """Generation-aware scoped-VMEM budget (~3/4 of physical: 96 MiB on 128 MiB parts,
    48 MiB on v7x's 64 MiB)."""
    try:
        cap = int(pltpu.get_tpu_info().vmem_capacity_bytes)
    except Exception:  # hardware query unavailable -> conservative (v7x-sized) default
        cap = 64 << 20
    return max(cap * 3 // 4, 16 << 20)


_single_buffer_flag = None


def _single_buffer_supported():
    """Feature-detect pl.Buffered(1) once (tiny probe compile), not per forward call."""
    global _single_buffer_flag
    if _single_buffer_flag is not None:
        return _single_buffer_flag

    def _probe(x_ref, w_ref, o_ref):
        o_ref[...] = x_ref[...] + w_ref[...]

    try:
        call = pl.pallas_call(
            _probe,
            out_shape=jax.ShapeDtypeStruct((16, 128), jnp.float32),
            grid=(2,),
            in_specs=[pl.BlockSpec((8, 128), lambda i: (i, 0)),
                      pl.BlockSpec((8, 128), lambda i: (0, 0),
                                   pipeline_mode=pl.Buffered(1))],
            out_specs=pl.BlockSpec((8, 128), lambda i: (i, 0)),
        )
        jax.jit(call).lower(
            jax.ShapeDtypeStruct((16, 128), jnp.float32),
            jax.ShapeDtypeStruct((8, 128), jnp.float32),
        ).compile()
        _single_buffer_flag = True
    except Exception:
        # Probe only: if this build rejects single-buffered blocks, fall back to the
        # default double-buffered weights. Real kernel builds never swallow errors.
        _single_buffer_flag = False
    return _single_buffer_flag


# ------------------------------------------------------------------------------ kernel
def mlp_kernel(x_ref, w1_ref, b1_ref, w2_ref, b2_ref, o_ref):
    # Layer 1: Linear -> ReLU. Native-dtype operands to the MXU, f32 accumulation.
    h = jnp.dot(x_ref[...], w1_ref[...], preferred_element_type=jnp.float32)
    h = h + b1_ref[...].astype(jnp.float32)
    h = jnp.maximum(h, 0.0)

    # F.normalize(p=2, dim=1): h / max(||h||, 1e-12) == h * rsqrt(max(sum(h^2), 1e-24)).
    # Row reduction on the XLU; exact rsqrt on the EUP; one VPU multiply.
    sumsq = jnp.sum(h * h, axis=-1, keepdims=True)
    inv_norm = lax.rsqrt(jnp.maximum(sumsq, 1e-24))
    h = h * inv_norm

    # Layer 2: plain Linear (bias=True), no activation / no l2norm.
    # NOTE: h is cast to the weight dtype; with bf16 weights this deviates slightly from
    # the f32 torch reference (f32 accumulation keeps it within bf16 tolerance).
    y = jnp.dot(h.astype(w2_ref.dtype), w2_ref[...], preferred_element_type=jnp.float32)
    y = y + b2_ref[...].astype(jnp.float32)
    o_ref[...] = y.astype(o_ref.dtype)


# ----------------------------------------------------------------------- cached builder
@functools.lru_cache(maxsize=None)
def _build_mlp_call(n_pad, tile_n, d_in, d_inner_p, d_out_p,
                    x_dtype_name, w_dtype_name, single_buffer_weights):
    x_dtype = jnp.dtype(x_dtype_name)
    w_dtype = jnp.dtype(w_dtype_name)

    # Grid-invariant weight/bias blocks: constant index_map; single-buffered if supported
    # (halves their resident VMEM footprint -- matters on v7x's 64 MiB).
    weight_mode = {"pipeline_mode": pl.Buffered(1)} if single_buffer_weights else {}

    grid = (n_pad // tile_n,)
    in_specs = [
        pl.BlockSpec((tile_n, d_in), lambda i: (i, 0)),
        pl.BlockSpec((d_in, d_inner_p), lambda i: (0, 0), **weight_mode),
        pl.BlockSpec((1, d_inner_p), lambda i: (0, 0), **weight_mode),
        pl.BlockSpec((d_inner_p, d_out_p), lambda i: (0, 0), **weight_mode),
        pl.BlockSpec((1, d_out_p), lambda i: (0, 0), **weight_mode),
    ]
    # Lane-dense output block (d_out_p is a multiple of 128) -> unmasked vst stores.
    out_specs = pl.BlockSpec((tile_n, d_out_p), lambda i: (i, 0))

    x_itemsize = x_dtype.itemsize
    w_itemsize = w_dtype.itemsize
    w_bufs = 1 if single_buffer_weights else 2
    weight_bytes = (d_in * d_inner_p + d_inner_p + d_inner_p * d_out_p + d_out_p) * w_itemsize
    vmem_needed = (
        2 * tile_n * (d_in + d_out_p) * x_itemsize     # double-buffered x / out tiles
        + w_bufs * weight_bytes                        # resident weights / biases
        + 4 * tile_n * max(d_inner_p, d_out_p) * 4     # f32 intermediates headroom
    )
    vmem_limit = int(min(max(2 * vmem_needed, 8 << 20), _vmem_budget()))

    cost = pl.CostEstimate(
        flops=2 * n_pad * (d_in * d_inner_p + d_inner_p * d_out_p),
        transcendentals=n_pad,  # one rsqrt per row
        bytes_accessed=n_pad * (d_in + d_out_p) * x_itemsize + weight_bytes,
    )

    return pl.pallas_call(
        mlp_kernel,
        out_shape=jax.ShapeDtypeStruct((n_pad, d_out_p), x_dtype),
        grid_spec=pltpu.PrefetchScalarGridSpec(
            num_scalar_prefetch=0,
            grid=grid,
            in_specs=in_specs,
            out_specs=out_specs,
        ),
        compiler_params=pltpu.CompilerParams(
            dimension_semantics=("parallel",),
            vmem_limit_bytes=vmem_limit,
        ),
        cost_estimate=cost,
    )


# ----------------------------------------------------------------------------- forward
@functools.partial(jax.jit, static_argnames=("tile_n", "single_buffer_weights"))
def _mlp_forward_jit(x, w1_t, b1, w2_t, b2, *, tile_n, single_buffer_weights):
    N, d_in = x.shape
    d_inner = w1_t.shape[1]
    d_out = w2_t.shape[1]

    # Lane-dense hidden / output feature widths (multiples of 128).
    d_inner_p = _round_up(d_inner, _LANE)
    d_out_p = _round_up(d_out, _LANE)

    # Row tile: dtype-packed sublane multiple; clamp so small N still gets a >=4-step
    # grid (double-buffer overlap, megacore sharding); cap by the VMEM budget.
    sub = _sublane_multiple(x.dtype)
    tile = max(sub, _round_up(min(tile_n, _round_up(pl.cdiv(N, 4), sub)), sub))

    x_itemsize = jnp.dtype(x.dtype).itemsize
    w_itemsize = jnp.dtype(w1_t.dtype).itemsize
    w_bufs = 1 if single_buffer_weights else 2
    weight_bytes = (d_in * d_inner_p + d_inner_p + d_inner_p * d_out_p + d_out_p) * w_itemsize
    per_row_bytes = (2 * (d_in + d_out_p) * x_itemsize      # double-buffered x / out rows
                     + 4 * max(d_inner_p, d_out_p) * 4)     # f32 intermediates headroom
    avail = _vmem_budget() - w_bufs * weight_bytes
    if avail > per_row_bytes * sub:
        tile = min(tile, max(sub, (avail // per_row_bytes) // sub * sub))

    n_pad = _round_up(N, tile)

    if n_pad != N:
        x = jnp.pad(x, ((0, n_pad - N), (0, 0)))
    # Zero-padded W/b columns are exactly neutral: relu(0)=0 contributes nothing to the
    # row norm, and zero rows of W2 contribute nothing to y. (In production, pre-pad the
    # weights once outside the forward; here the pads are tiny and fused by XLA.)
    if d_inner_p != d_inner:
        w1_t = jnp.pad(w1_t, ((0, 0), (0, d_inner_p - d_inner)))
        b1 = jnp.pad(b1, ((0, 0), (0, d_inner_p - d_inner)))
        w2_t = jnp.pad(w2_t, ((0, d_inner_p - d_inner), (0, 0)))
    if d_out_p != d_out:
        w2_t = jnp.pad(w2_t, ((0, 0), (0, d_out_p - d_out)))
        b2 = jnp.pad(b2, ((0, 0), (0, d_out_p - d_out)))

    # TODO(synk): for production feature widths where resident weight bytes approach
    # ~half the VMEM budget (earlier on v7x's 64 MiB), add a K-tiled reduction grid axis
    # ("arbitrary") with a VMEM f32 accumulator instead of fully-resident weights; on
    # v7x also cast weights/x to bf16 in the wrapper (bf16-native MXU, f32 accumulation).

    call = _build_mlp_call(n_pad, tile, d_in, d_inner_p, d_out_p,
                           jnp.dtype(x.dtype).name, jnp.dtype(w1_t.dtype).name,
                           single_buffer_weights)
    out = call(x, w1_t, b1, w2_t, b2)
    return out[:N, :d_out]


def mlp_forward(x, w1_t, b1, w2_t, b2, *, tile_n=512):
    """Fused MLP forward. x: [N, D_in]; w*_t: [in, out]; b*: [1, out]."""
    return _mlp_forward_jit(x, w1_t, b1, w2_t, b2, tile_n=tile_n,
                            single_buffer_weights=_single_buffer_supported())


# ------------------------------------------------------------------------------- demo
def _torch_linear_init(key, fan_in, fan_out):
    """Deterministic nn.Linear-style init: U(-1/sqrt(fan_in), 1/sqrt(fan_in))."""
    kw, kb = jax.random.split(key)
    bound = 1.0 / jnp.sqrt(jnp.float32(fan_in))
    w = jax.random.uniform(kw, (fan_out, fan_in), jnp.float32, -bound, bound)
    b = jax.random.uniform(kb, (fan_out,), jnp.float32, -bound, bound)
    return w, b


def _reference_mlp(x, w1, b1, w2, b2):
    # Direct translation of the PyTorch module (F.normalize uses max(norm, 1e-12)).
    h = jnp.maximum(x @ w1.T + b1, 0.0)
    norm = jnp.sqrt(jnp.sum(h * h, axis=1, keepdims=True))
    h = h / jnp.maximum(norm, 1e-12)
    return h @ w2.T + b2


if __name__ == "__main__":
    # MLP(layer_config): dim_in=32, dim_out=16, num_layers=2, dim_inner=None -> dim_inner=32
    # N deliberately not a tile multiple to exercise padding + the multi-step grid path.
    N, DIM_IN, DIM_OUT = 50, 32, 16
    DIM_INNER = DIM_IN

    key = jax.random.PRNGKey(0)
    kx, k1, k2 = jax.random.split(key, 3)

    x = jax.random.normal(kx, (N, DIM_IN), jnp.float32)
    w1, b1 = _torch_linear_init(k1, DIM_IN, DIM_INNER)   # Linear(dim_in -> dim_inner)
    w2, b2 = _torch_linear_init(k2, DIM_INNER, DIM_OUT)  # Linear(dim_inner -> dim_out)

    # Pre-transpose weights to [in, out]; reshape biases to [1, out] rows.
    out = mlp_forward(
        x,
        w1.T, b1.reshape(1, DIM_INNER),
        w2.T, b2.reshape(1, DIM_OUT),
    )
    out = jax.block_until_ready(out)

    ref = _reference_mlp(x, w1, b1, w2, b2)
    assert out.shape == (N, DIM_OUT)
    assert jnp.allclose(out, ref, atol=1e-5, rtol=1e-5), "mismatch vs reference"

    print("KERNEL_OK")
</pallas_src>

<mosaic_0001>
module attributes {stable_mosaic.version = 11 : i64} {
  func.func @mlp_kernel(%arg0: i32, %arg1: memref<16x32xf32, #tpu.memory_space<vmem>>, %arg2: memref<32x128xf32, #tpu.memory_space<vmem>>, %arg3: memref<1x128xf32, #tpu.memory_space<vmem>>, %arg4: memref<128x128xf32, #tpu.memory_space<vmem>>, %arg5: memref<1x128xf32, #tpu.memory_space<vmem>>, %arg6: memref<16x128xf32, #tpu.memory_space<vmem>>) attributes {dimension_semantics = [#tpu.dimension_semantics<parallel>], iteration_bounds = array<i64: 4>, scalar_prefetch = 0 : i64, scratch_operands = 0 : i64, tpu.core_type = #tpu.core_type<tc>, window_params = [{transform_indices = @transform_0, window_bounds = array<i64: 16, 32>}, {pipeline_mode = #tpu.pipeline_mode<synchronous>, transform_indices = @transform_1, window_bounds = array<i64: 32, 128>}, {pipeline_mode = #tpu.pipeline_mode<synchronous>, transform_indices = @transform_2, window_bounds = array<i64: 1, 128>}, {pipeline_mode = #tpu.pipeline_mode<synchronous>, transform_indices = @transform_3, window_bounds = array<i64: 128, 128>}, {pipeline_mode = #tpu.pipeline_mode<synchronous>, transform_indices = @transform_4, window_bounds = array<i64: 1, 128>}, {transform_indices = @transform_5, window_bounds = array<i64: 16, 128>}]} {
    %c0 = arith.constant 0 : index
    %c0_0 = arith.constant 0 : index
    %0 = vector.load %arg1[%c0, %c0_0] : memref<16x32xf32, #tpu.memory_space<vmem>>, vector<16x32xf32>
    %c0_1 = arith.constant 0 : index
    %c0_2 = arith.constant 0 : index
    %1 = vector.load %arg2[%c0_1, %c0_2] : memref<32x128xf32, #tpu.memory_space<vmem>>, vector<32x128xf32>
    %cst = arith.constant dense<0.000000e+00> : vector<16x128xf32>
    %2 = tpu.matmul %0, %1, %cst {dimension_numbers = #tpu.dot_dimension_numbers<[1], [0], [0], [1], [0, 0, 1, 1], [], []>} : vector<16x32xf32>, vector<32x128xf32>, vector<16x128xf32> -> vector<16x128xf32>
    %c0_3 = arith.constant 0 : index
    %c0_4 = arith.constant 0 : index
    %3 = vector.load %arg3[%c0_3, %c0_4] : memref<1x128xf32, #tpu.memory_space<vmem>>, vector<1x128xf32>
    %4 = vector.broadcast %3 : vector<1x128xf32> to vector<16x128xf32>
    %5 = arith.addf %2, %4 : vector<16x128xf32>
    %cst_5 = arith.constant 0.000000e+00 : f32
    %6 = vector.broadcast %cst_5 : f32 to vector<16x128xf32>
    %7 = arith.maximumf %5, %6 : vector<16x128xf32>
    %8 = arith.mulf %7, %7 : vector<16x128xf32>
    %cst_6 = arith.constant dense<0.000000e+00> : vector<16xf32>
    %9 = vector.multi_reduction <add>, %8, %cst_6 [1] : vector<16x128xf32> to vector<16xf32>
    %10 = vector.shape_cast %9 : vector<16xf32> to vector<16x1xf32>
    %cst_7 = arith.constant 1.000000e-24 : f32
    %11 = vector.broadcast %cst_7 : f32 to vector<16x1xf32>
    %12 = arith.maximumf %10, %11 : vector<16x1xf32>
    %13 = math.rsqrt %12 : vector<16x1xf32>
    %14 = vector.broadcast %13 : vector<16x1xf32> to vector<16x128xf32>
    %15 = arith.mulf %7, %14 : vector<16x128xf32>
    %c0_8 = arith.constant 0 : index
    %c0_9 = arith.constant 0 : index
    %16 = vector.load %arg4[%c0_8, %c0_9] : memref<128x128xf32, #tpu.memory_space<vmem>>, vector<128x128xf32>
    %cst_10 = arith.constant dense<0.000000e+00> : vector<16x128xf32>
    %17 = tpu.matmul %15, %16, %cst_10 {dimension_numbers = #tpu.dot_dimension_numbers<[1], [0], [0], [1], [0, 0, 1, 1], [], []>} : vector<16x128xf32>, vector<128x128xf32>, vector<16x128xf32> -> vector<16x128xf32>
    %c0_11 = arith.constant 0 : index
    %c0_12 = arith.constant 0 : index
    %18 = vector.load %arg5[%c0_11, %c0_12] : memref<1x128xf32, #tpu.memory_space<vmem>>, vector<1x128xf32>
    %19 = vector.broadcast %18 : vector<1x128xf32> to vector<16x128xf32>
    %20 = arith.addf %17, %19 : vector<16x128xf32>
    %c0_13 = arith.constant 0 : index
    %c0_14 = arith.constant 0 : index
    %21 = vector.load %arg6[%c0_13, %c0_14] : memref<16x128xf32, #tpu.memory_space<vmem>>, vector<16x128xf32>
    tpu.vector_store %arg6[%c0_13, %c0_14], %20 {strides = array<i32>} : memref<16x128xf32, #tpu.memory_space<vmem>>, vector<16x128xf32>,
    return
  }
  func.func @transform_0(%arg0: i32) -> (i32, i32) {
    %c0_i32 = arith.constant 0 : i32
    %c0_i32_0 = arith.constant 0 : i32
    return %arg0, %c0_i32 : i32, i32
  }
  func.func @transform_1(%arg0: i32) -> (i32, i32) {
    %c0_i32 = arith.constant 0 : i32
    %c0_i32_0 = arith.constant 0 : i32
    %c0_i32_1 = arith.constant 0 : i32
    return %c0_i32, %c0_i32_0 : i32, i32
  }
  func.func @transform_2(%arg0: i32) -> (i32, i32) {
    %c0_i32 = arith.constant 0 : i32
    %c0_i32_0 = arith.constant 0 : i32
    %c0_i32_1 = arith.constant 0 : i32
    return %c0_i32, %c0_i32_0 : i32, i32
  }
  func.func @transform_3(%arg0: i32) -> (i32, i32) {
    %c0_i32 = arith.constant 0 : i32
    %c0_i32_0 = arith.constant 0 : i32
    %c0_i32_1 = arith.constant 0 : i32
    return %c0_i32, %c0_i32_0 : i32, i32
  }
  func.func @transform_4(%arg0: i32) -> (i32, i32) {
    %c0_i32 = arith.constant 0 : i32
    %c0_i32_0 = arith.constant 0 : i32
    %c0_i32_1 = arith.constant 0 : i32
    return %c0_i32, %c0_i32_0 : i32, i32
  }
  func.func @transform_5(%arg0: i32) -> (i32, i32) {
    %c0_i32 = arith.constant 0 : i32
    %c0_i32_0 = arith.constant 0 : i32
    return %arg0, %c0_i32 : i32, i32
  }
}

</mosaic_0001>

<llo_original>
// kernel: _mlp_forward_jit.1
$region0: #{_mlp_forward_jit.1}
  #allocation0 [shape = 'u32[]', space=smem, size = 0x4, offset = 0x4, fixed_abs, tag = 'smem constant byte address 0x4 - core index']
  #allocation1 [shape = 'u32[72,128]{1,0:T(1,128)}', space=vmem, size = 0x9000, scoped, tag = 'internal scratch']
  %s0 = inlined_call_operand.vmem [shape: f32[64,32], index: 0, kind: input, shape index: {}]
  %s1 = inlined_call_operand.vmem [shape: f32[32,128], index: 1, kind: input, shape index: {}]
  %s2 = inlined_call_operand.vmem [shape: f32[1,128], index: 2, kind: input, shape index: {}]
  %s3 = inlined_call_operand.vmem [shape: f32[128,128], index: 3, kind: input, shape index: {}]
  %s4 = inlined_call_operand.vmem [shape: f32[1,128], index: 4, kind: input, shape index: {}]
  %s5 = inlined_call_operand.vmem [shape: f32[64,128], index: 5, kind: output, shape index: {}]
  %s6 = sld [smem:[#allocation0]]
  $region53: #{_mlp_forward_jit.1} parent=0
    _
  %s8 = ssub.s32 1, %s6
  %s9 = scalar_select 0, %s8, %s6
  loop: start=0, step=1, limit=6
  $region2: #{_mlp_forward_jit.1} parent=0 // loop_pre_header
    _
  $region3: #{_mlp_forward_jit.1} parent=0 // loop_header
    %s11 = sphi 0, %s15
    %p12 = scmp.ge.s32.totalorder %s11, 6
    %s21 = sphi 0, %s23
    %s24 = sphi 0, %s21
    %s25 = sphi 0, %s24
    %s41 = sphi 0, %s25
    %s45 = sphi 0, %s45
    %s47 = sphi 0, %s45
    %s48 = sphi 0, %s47
    %s62 = sphi 0, %s48
    %s66 = sphi 0, %s66
    %s68 = sphi 0, %s66
    %s69 = sphi 0, %s68
    %s83 = sphi 0, %s69
    %s87 = sphi 0, %s87
    %s89 = sphi 0, %s87
    %s90 = sphi 0, %s89
    %s104 = sphi 0, %s90
    %s108 = sphi 0, %s108
    %s110 = sphi 0, %s108
    %s111 = sphi 0, %s110
    %s125 = sphi 0, %s111
    %s131 = sphi 0, %s133
    %s134 = sphi 0, %s131
    %s135 = sphi 0, %s134
    %s151 = sphi 0, %s135
  $region4: #{_mlp_forward_jit.1} parent=0 // loop_header_branch
    %14 = sbr.rel (%p12) target = $region8
  $region5: #{_mlp_forward_jit.1} parent=0 // loop_body
    %s16 = ssub.s32 %s11, 1
    %s17 = ssub.s32 %s11, 2
    %s18 = sadd.s32 %s11, 1
    %s19 = ssub.s32 %s11, %s18
    %p20 = scmp.eq.s32.totalorder %s19, 0
    %s22 = sadd.s32 %s21, 1
    %s23 = scalar_select %p20, %s21, %s22
    %p26 = pneg %p20
    %p27 = scmp.eq.s32.totalorder %s11, 3
    %p28 = por %p26, %p27
    %p29 = scmp.ne.s32.totalorder %s21, %s24
    %p30 = scmp.eq.s32.totalorder %s11, 0
    %p31 = por %p29, %p30
    %p32 = scmp.ne.s32.totalorder %s21, %s24
    %p33 = scmp.eq.s32.totalorder %s16, 3
    %p34 = por %p32, %p33
    %p35 = scmp.ne.s32.totalorder %s24, %s25
    %p36 = scmp.eq.s32.totalorder %s16, 0
    %p37 = por %p35, %p36
    %p38 = scmp.ne.s32.totalorder %s24, %s25
    %p39 = scmp.eq.s32.totalorder %s17, 3
    %p40 = por %p38, %p39
    %p42 = scmp.ne.s32.totalorder %s25, %s41
    %p43 = scmp.eq.s32.totalorder %s17, 0
    %p44 = por %p42, %p43
    %s46 = sadd.s32 %s45, 1
    %p49 = scmp.eq.s32.totalorder %s11, 3
    %p50 = scmp.ne.s32.totalorder %s45, %s47
    %p51 = scmp.eq.s32.totalorder %s11, 0
    %p52 = por %p50, %p51
    %p53 = scmp.ne.s32.totalorder %s45, %s47
    %p54 = scmp.eq.s32.totalorder %s16, 3
    %p55 = por %p53, %p54
    %p56 = scmp.ne.s32.totalorder %s47, %s48
    %p57 = scmp.eq.s32.totalorder %s16, 0
    %p58 = por %p56, %p57
    %p59 = scmp.ne.s32.totalorder %s47, %s48
    %p60 = scmp.eq.s32.totalorder %s17, 3
    %p61 = por %p59, %p60
    %p63 = scmp.ne.s32.totalorder %s48, %s62
    %p64 = scmp.eq.s32.totalorder %s17, 0
    %p65 = por %p63, %p64
    %s67 = sadd.s32 %s66, 1
    %p70 = scmp.eq.s32.totalorder %s11, 3
    %p71 = scmp.ne.s32.totalorder %s66, %s68
    %p72 = scmp.eq.s32.totalorder %s11, 0
    %p73 = por %p71, %p72
    %p74 = scmp.ne.s32.totalorder %s66, %s68
    %p75 = scmp.eq.s32.totalorder %s16, 3
    %p76 = por %p74, %p75
    %p77 = scmp.ne.s32.totalorder %s68, %s69
    %p78 = scmp.eq.s32.totalorder %s16, 0
    %p79 = por %p77, %p78
    %p80 = scmp.ne.s32.totalorder %s68, %s69
    %p81 = scmp.eq.s32.totalorder %s17, 3
    %p82 = por %p80, %p81
    %p84 = scmp.ne.s32.totalorder %s69, %s83
    %p85 = scmp.eq.s32.totalorder %s17, 0
    %p86 = por %p84, %p85
    %s88 = sadd.s32 %s87, 1
    %p91 = scmp.eq.s32.totalorder %s11, 3
    %p92 = scmp.ne.s32.totalorder %s87, %s89
    %p93 = scmp.eq.s32.totalorder %s11, 0
    %p94 = por %p92, %p93
    %p95 = scmp.ne.s32.totalorder %s87, %s89
    %p96 = scmp.eq.s32.totalorder %s16, 3
    %p97 = por %p95, %p96
    %p98 = scmp.ne.s32.totalorder %s89, %s90
    %p99 = scmp.eq.s32.totalorder %s16, 0
    %p100 = por %p98, %p99
    %p101 = scmp.ne.s32.totalorder %s89, %s90
    %p102 = scmp.eq.s32.totalorder %s17, 3
    %p103 = por %p101, %p102
    %p105 = scmp.ne.s32.totalorder %s90, %s104
    %p106 = scmp.eq.s32.totalorder %s17, 0
    %p107 = por %p105, %p106
    %s109 = sadd.s32 %s108, 1
    %p112 = scmp.eq.s32.totalorder %s11, 3
    %p113 = scmp.ne.s32.totalorder %s108, %s110
    %p114 = scmp.eq.s32.totalorder %s11, 0
    %p115 = por %p113, %p114
    %p116 = scmp.ne.s32.totalorder %s108, %s110
    %p117 = scmp.eq.s32.totalorder %s16, 3
    %p118 = por %p116, %p117
    %p119 = scmp.ne.s32.totalorder %s110, %s111
    %p120 = scmp.eq.s32.totalorder %s16, 0
    %p121 = por %p119, %p120
    %p122 = scmp.ne.s32.totalorder %s110, %s111
    %p123 = scmp.eq.s32.totalorder %s17, 3
    %p124 = por %p122, %p123
    %p126 = scmp.ne.s32.totalorder %s111, %s125
    %p127 = scmp.eq.s32.totalorder %s17, 0
    %p128 = por %p126, %p127
    %s129 = ssub.s32 %s11, %s18
    %p130 = scmp.eq.s32.totalorder %s129, 0
    %s132 = sadd.s32 %s131, 1
    %s133 = scalar_select %p130, %s131, %s132
    %p136 = pneg %p130
    %p137 = scmp.eq.s32.totalorder %s11, 3
    %p138 = por %p136, %p137
    %p139 = scmp.ne.s32.totalorder %s131, %s134
    %p140 = scmp.eq.s32.totalorder %s11, 0
    %p141 = por %p139, %p140
    %p142 = scmp.ne.s32.totalorder %s131, %s134
    %p143 = scmp.eq.s32.totalorder %s16, 3
    %p144 = por %p142, %p143
    %p145 = scmp.ne.s32.totalorder %s134, %s135
    %p146 = scmp.eq.s32.totalorder %s16, 0
    %p147 = por %p145, %p146
    %p148 = scmp.ne.s32.totalorder %s134, %s135
    %p149 = scmp.eq.s32.totalorder %s17, 3
    %p150 = por %p148, %p149
    %p152 = scmp.ne.s32.totalorder %s135, %s151
    %p153 = scmp.eq.s32.totalorder %s17, 0
    %p154 = por %p152, %p153
    %p155 = scmp.le.s32.totalorder 1, %s11
    %p156 = scmp.lt.s32.totalorder %s11, 5
    %p157 = pnand %p155, %p156
    %p158 = pneg %p157
    // Predicated region
    $region9: #{_mlp_forward_jit.1} parent=5 // pred_check
      _
    $region10: #{_mlp_forward_jit.1} parent=5 // pred_check_branch
      %160 = sbr.rel (%p157) target = $region12
    $region11: #{_mlp_forward_jit.1} parent=5 // pred_region
      %s161 = ssub.s32 %s11, 1
      // Predicated region
      $region13: #{_mlp_forward_jit.1} parent=11 // pred_check
        %p162 = pneg %p58
      $region14: #{_mlp_forward_jit.1} parent=11 // pred_check_branch
        %164 = sbr.rel (%p162) target = $region16
      $region15: #{_mlp_forward_jit.1} parent=11 // pred_region
        _
      $region16: #{_mlp_forward_jit.1} parent=11 // pred_fallthru
        _
      // Predicated region
      $region17: #{_mlp_forward_jit.1} parent=11 // pred_check
        %p165 = pneg %p79
      $region18: #{_mlp_forward_jit.1} parent=11 // pred_check_branch
        %167 = sbr.rel (%p165) target = $region20
      $region19: #{_mlp_forward_jit.1} parent=11 // pred_region
        _
      $region20: #{_mlp_forward_jit.1} parent=11 // pred_fallthru
        _
      // Predicated region
      $region21: #{_mlp_forward_jit.1} parent=11 // pred_check
        %p168 = pneg %p100
      $region22: #{_mlp_forward_jit.1} parent=11 // pred_check_branch
        %170 = sbr.rel (%p168) target = $region24
      $region23: #{_mlp_forward_jit.1} parent=11 // pred_region
        _
      $region24: #{_mlp_forward_jit.1} parent=11 // pred_fallthru
        _
      // Predicated region
      $region25: #{_mlp_forward_jit.1} parent=11 // pred_check
        %p171 = pneg %p121
      $region26: #{_mlp_forward_jit.1} parent=11 // pred_check_branch
        %173 = sbr.rel (%p171) target = $region28
      $region27: #{_mlp_forward_jit.1} parent=11 // pred_region
        _
      $region28: #{_mlp_forward_jit.1} parent=11 // pred_fallthru
        _
    $region12: #{_mlp_forward_jit.1} parent=5 // pred_fallthru
      _
    %p174 = scmp.lt.s32.totalorder %s11, 4
    // Predicated region
    $region29: #{_mlp_forward_jit.1} parent=5 // pred_check
      %p175 = pneg %p174
    $region30: #{_mlp_forward_jit.1} parent=5 // pred_check_branch
      %177 = sbr.rel (%p175) target = $region32
    $region31: #{_mlp_forward_jit.1} parent=5 // pred_region
      // Predicated region
      $region33: #{_mlp_forward_jit.1} parent=31 // pred_check
        %p178 = pneg %p31
      $region34: #{_mlp_forward_jit.1} parent=31 // pred_check_branch
        %180 = sbr.rel (%p178) target = $region36
      $region35: #{_mlp_forward_jit.1} parent=31 // pred_region
        %s181 = smul.u32 2, %s11
        %p182 = scmp.lt.s32.totalorder %s181, 7
        %s183 = scalar_select %p182, %s181, 7
        %s184 = smul.addr %s183, 8
        %s185 = scalar_lea.vmem %s0, %s184
        %s186 = smul.u32 2, %s11
      $region36: #{_mlp_forward_jit.1} parent=31 // pred_fallthru
        _
    $region32: #{_mlp_forward_jit.1} parent=5 // pred_fallthru
      _
    %p187 = scmp.le.s32.totalorder 1, %s11
    %p188 = scmp.lt.s32.totalorder %s11, 5
    %p189 = pnand %p187, %p188
    %p190 = pneg %p189
    // Predicated region
    $region37: #{_mlp_forward_jit.1} parent=5 // pred_check
      _
    $region38: #{_mlp_forward_jit.1} parent=5 // pred_check_branch
      %192 = sbr.rel (%p189) target = $region40
    $region39: #{_mlp_forward_jit.1} parent=5 // pred_region
      %s193 = ssub.s32 %s11, 1
      %s194 = smul.u32 2, %s16
      %p195 = scmp.lt.s32.totalorder %s194, 7
      %s196 = scalar_select %p195, %s194, 7
      %s197 = smul.addr %s196, 8
      %s198 = scalar_lea.vmem %s0, %s197
      %p199 = pneg %p37
      %p200 = pneg %p34
      %p201 = pneg %p58
      %p202 = pneg %p55
      %p203 = pneg %p79
      %p204 = pneg %p76
      %p205 = pneg %p100
      %p206 = pneg %p97
      %p207 = pneg %p121
      %p208 = pneg %p118
      %p209 = pneg %p147
      %p210 = pneg %p144
      %s211 = smul.u32 2, %s16
      %p212 = scmp.lt.s32.totalorder %s211, 7
      %s213 = scalar_select %p212, %s211, 7
      %s214 = smul.addr %s213, 8
      %s215 = scalar_lea.vmem %s5, %s214
      %s216 = smul.u32 2, %s16
      %p217 = scmp.lt.s32.totalorder %s216, 7
      %s218 = scalar_select %p217, %s216, 7
      %s219 = smul.addr %s218, 8
      %s220 = scalar_lea.vmem %s0, %s219
      %s221 = smul.u32 2, %s16
      %s222 = smul.u32 2, %s16
      %p223 = scmp.lt.s32.totalorder %s222, 7
      %s224 = scalar_select %p223, %s222, 7
      %s225 = smul.addr %s224, 8
      %s226 = scalar_lea.vmem %s5, %s225
      %s227 = smul.u32 2, %s16
      %v228 = vld [vmem:[%s220] sm:$0xff]
      %v229 = vld [vmem:[%s220 + $0x8] sm:$0xff]
      %v230 = vld [vmem:[%s1] sm:$0xff]
      %v231 = vld [vmem:[%s1 + $0x8] sm:$0xff]
      %v232 = vld [vmem:[%s1 + $0x10] sm:$0xff]
      %v233 = vld [vmem:[%s1 + $0x18] sm:$0xff]
      %v234 = vld [vmem:[%s2] sm:$0x1]
      %v236 = vperm.slane %v234, 0
      %vm238 = vcmask 261120
      %v240 = vsel %vm238, %v228, 0
      %v243 = vsel %vm238, %v229, 0
      %245 = vmatpush.msra.mxu0 0.0
      %246 = vmatpush.msra.mxu0 0.0
      %247 = vmatpush.msra.mxu0 0.0
      %248 = vmatpush.msra.mxu0 0.0
      %249 = vmatpush.msra.mxu0 0.0
      %250 = vmatpush.msra.mxu0 0.0
      %251 = vmatpush.msra.mxu0 0.0
      %252 = vmatpush.msra.mxu0 0.0
      %253 = vmatpush.msra.mxu0 0.0
      %254 = vmatpush.msra.mxu0 0.0
      %255 = vmatpush.msra.mxu0 0.0
      %256 = vmatpush.msra.mxu0 0.0
      %257 = vmatpush.msra.mxu0 %v233
      %258 = vmatpush.msra.mxu0 %v232
      %259 = vmatpush.msra.mxu0 %v231
      %260 = vmatpush.msra.mxu0 %v230
      %261 = vmatmul.f32.gmra.mxu0 %v240
      %v262 = vpop.f32.mrf.mxu0
      %v263 = vadd.f32 %v236, %v262
      %264 = vmatmul.f32.gmra.mxu0 %v243
      %v265 = vpop.f32.mrf.mxu0
      %v266 = vadd.f32 %v236, %v265
      %267 = vdwg.mxu0
      %v268 = vmax.f32 %v263, 0.0
      %v269 = vmax.f32 %v266, 0.0
      %v270 = vmul.f32 %v268, %v268
      %v271 = vmul.f32 %v269, %v269
      %272 = vadd.xlane.f32.xlu0 %v270
      %v273 = vpop.xlane.xlu0 %272
      %274 = vadd.xlane.f32.xlu0 %v271
      %v275 = vpop.xlane.xlu0 %274
      %v276 = vmax.f32 %v273, 1e-24
      %v277 = vmax.f32 %v275, 1e-24
      %v278 = vrsqrt.pop %v276
      %v279 = vmul.f32 %v278, %v276
      %v280 = vmul.f32 %v279, %v278
      %v281 = vmul.f32 0.5, %v280
      %v282 = vsub.f32 1.5, %v281
      %v283 = vmul.f32 %v278, %v282
      %vm284 = vweird.f32 %v276
      %vm285 = vweird.f32 %v278
      %vm286 = vmor %vm284, %vm285
      %v287 = vsel %vm286, %v278, %v283
      %v288 = vrsqrt.pop %v277
      %v289 = vmul.f32 %v288, %v277
      %v290 = vmul.f32 %v289, %v288
      %v291 = vmul.f32 0.5, %v290
      %v292 = vsub.f32 1.5, %v291
      %v293 = vmul.f32 %v288, %v292
      %vm294 = vweird.f32 %v277
      %vm295 = vweird.f32 %v288
      %vm296 = vmor %vm294, %vm295
      %v297 = vsel %vm296, %v288, %v293
      %v298 = vmul.f32 %v268, %v287
      %v299 = vmul.f32 %v269, %v297
      %v300 = vld [vmem:[%s3] sm:$0xff]
      %v301 = vld [vmem:[%s3 + $0x8] sm:$0xff]
      %v302 = vld [vmem:[%s3 + $0x10] sm:$0xff]
      %v303 = vld [vmem:[%s3 + $0x18] sm:$0xff]
      %v304 = vld [vmem:[%s3 + $0x20] sm:$0xff]
      %v305 = vld [vmem:[%s3 + $0x28] sm:$0xff]
      %v306 = vld [vmem:[%s3 + $0x30] sm:$0xff]
      %v307 = vld [vmem:[%s3 + $0x38] sm:$0xff]
      %v308 = vld [vmem:[%s3 + $0x40] sm:$0xff]
      %v309 = vld [vmem:[%s3 + $0x48] sm:$0xff]
      %v310 = vld [vmem:[%s3 + $0x50] sm:$0xff]
      %v311 = vld [vmem:[%s3 + $0x58] sm:$0xff]
      %v312 = vld [vmem:[%s3 + $0x60] sm:$0xff]
      %v313 = vld [vmem:[%s3 + $0x68] sm:$0xff]
      %v314 = vld [vmem:[%s3 + $0x70] sm:$0xff]
      %v315 = vld [vmem:[%s3 + $0x78] sm:$0xff]
      %v316 = vld [vmem:[%s4] sm:$0x1]
      %v318 = vperm.slane %v316, 0
      %320 = vmatpush.msra.mxu0 %v315
      %321 = vmatpush.msra.mxu0 %v314
      %322 = vmatpush.msra.mxu0 %v313
      %323 = vmatpush.msra.mxu0 %v312
      %324 = vmatpush.msra.mxu0 %v311
      %325 = vmatpush.msra.mxu0 %v310
      %326 = vmatpush.msra.mxu0 %v309
      %327 = vmatpush.msra.mxu0 %v308
      %328 = vmatpush.msra.mxu0 %v307
      %329 = vmatpush.msra.mxu0 %v306
      %330 = vmatpush.msra.mxu0 %v305
      %331 = vmatpush.msra.mxu0 %v304
      %332 = vmatpush.msra.mxu0 %v303
      %333 = vmatpush.msra.mxu0 %v302
      %334 = vmatpush.msra.mxu0 %v301
      %335 = vmatpush.msra.mxu0 %v300
      %336 = vmatmul.f32.gmra.mxu0 %v298
      %v337 = vpop.f32.mrf.mxu0
      %v338 = vadd.f32 %v318, %v337
      %339 = vmatmul.f32.gmra.mxu0 %v299
      %v340 = vpop.f32.mrf.mxu0
      %v341 = vadd.f32 %v318, %v340
      %342 = vdwg.mxu0
      %343 = vst [vmem:[%s226] sm:$0xff] %v338
      %344 = vst [vmem:[%s226 + $0x8] sm:$0xff] %v341
      %s345 = smul.u32 2, %s16
      %p346 = scmp.lt.s32.totalorder %s345, 7
      %s347 = scalar_select %p346, %s345, 7
      %s348 = smul.addr %s347, 8
      %s349 = scalar_lea.vmem %s5, %s348
      // Predicated region
      $region41: #{_mlp_forward_jit.1} parent=39 // pred_check
        %p350 = pneg %p144
      $region42: #{_mlp_forward_jit.1} parent=39 // pred_check_branch
        %352 = sbr.rel (%p350) target = $region44
      $region43: #{_mlp_forward_jit.1} parent=39 // pred_region
        %s353 = smul.u32 2, %s16
      $region44: #{_mlp_forward_jit.1} parent=39 // pred_fallthru
        _
    $region40: #{_mlp_forward_jit.1} parent=5 // pred_fallthru
      _
    %p354 = scmp.le.s32.totalorder 2, %s11
    // Predicated region
    $region45: #{_mlp_forward_jit.1} parent=5 // pred_check
      %p355 = pneg %p354
    $region46: #{_mlp_forward_jit.1} parent=5 // pred_check_branch
      %357 = sbr.rel (%p355) target = $region48
    $region47: #{_mlp_forward_jit.1} parent=5 // pred_region
      %s358 = ssub.s32 %s11, 2
      // Predicated region
      $region49: #{_mlp_forward_jit.1} parent=47 // pred_check
        %p359 = pneg %p150
      $region50: #{_mlp_forward_jit.1} parent=47 // pred_check_branch
        %361 = sbr.rel (%p359) target = $region52
      $region51: #{_mlp_forward_jit.1} parent=47 // pred_region
        %s362 = smul.u32 2, %s17
        %p363 = scmp.lt.s32.totalorder %s362, 7
        %s364 = scalar_select %p363, %s362, 7
        %s365 = smul.addr %s364, 8
        %s366 = scalar_lea.vmem %s5, %s365
      $region52: #{_mlp_forward_jit.1} parent=47 // pred_fallthru
        _
    $region48: #{_mlp_forward_jit.1} parent=5 // pred_fallthru
      _
  $region6: #{_mlp_forward_jit.1} parent=0 // loop_footer
    %s15 = sadd.s32 1, %s11
  $region7: #{_mlp_forward_jit.1} parent=0 // loop_footer_branch
    %10 = sbr.rel target = $region3
  $region8: #{_mlp_forward_jit.1} parent=0 // loop_exit
    _

</llo_original>
